<compile_context>
chip_gen: v6e
topology: v6e:2x2x1
jax: 0.10.0
libtpu: 0.0.40
codegen_flags: <defaults>
</compile_context>

<pallas_src>
import functools
import math

import jax
import jax.numpy as jnp
import numpy as np
from jax.experimental import pallas as pl
from jax.experimental.pallas import tpu as pltpu


_LANE = 128
_SUBLANE = 8
_MAX_ROW_TILE = 512
_VMEM_TILE_BUDGET = 8 * 1024 * 1024   # budget for ~4 live f32 (tm, d_pad) buffers


def _round_up(x, m):
    return ((x + m - 1) // m) * m


def _pe_kernel(p_ref, div_ref, phase_ref, o_ref):
    # p_ref:     (tm, d_pad) per-row varying, OR (1, d_pad) shared row (sublane splat)
    # div_ref:   (1, d_pad)  div_full[2k] = div_full[2k+1] = exp(2k * -ln(1e4)/d_model)
    # phase_ref: (1, d_pad)  0.0 on even lanes, pi/2 on odd lanes  (cos == sin(.+pi/2))
    # o_ref:     (tm, d_pad) lane-dense, unmasked stores
    angle = p_ref[...] * div_ref[...] + phase_ref[...]
    o_ref[...] = jnp.broadcast_to(jnp.sin(angle), o_ref.shape).astype(o_ref.dtype)


def _pick_row_tile(rows, d_pad):
    """Row tile: multiple of 8, VMEM-budgeted, >= 2 grid steps when rows allow."""
    vmem_cap = (_VMEM_TILE_BUDGET // (4 * d_pad * 4)) // _SUBLANE * _SUBLANE
    cap = max(_SUBLANE, min(_MAX_ROW_TILE, vmem_cap))
    rows8 = _round_up(rows, _SUBLANE)
    if rows8 >= 2 * _SUBLANE:
        # Keep at least two grid steps so megacore (v7x) can split the row axis.
        cap = min(cap, _round_up(rows8 // 2, _SUBLANE))
    return max(_SUBLANE, min(cap, rows8))


def passend_embedding(sequence, *, max_len, d_model):
    """JAX/Pallas equivalent of PassendEmbedding.forward."""
    assert d_model % 2 == 0, "d_model must be even (the torch module assumes this too)"
    b, s, _ = sequence.shape
    d2 = d_model // 2
    # torch broadcasting of `passend * div_term` / `pe[:, 0::2] = ...` requires:
    assert s in (1, d2), f"sequence dim 1 must be 1 or d_model//2={d2}, got {s}"
    assert b in (1, max_len), f"sequence dim 0 must be 1 or max_len={max_len}, got {b}"
    rows = min(s, max_len)                     # torch: self.pe[:, :sequence.size(1)]

    # ---- host-side NumPy constants (compile-time under jit) ----------------------
    d_pad = _round_up(d_model, _LANE)
    div_half = np.exp(np.arange(0, d_model, 2, dtype=np.float32)
                      * (-math.log(10000.0) / d_model))              # (d2,)
    div_full = np.zeros((1, d_pad), np.float32)
    div_full[0, 0:d_model:2] = div_half
    div_full[0, 1:d_model:2] = div_half
    phase_full = np.zeros((1, d_pad), np.float32)
    phase_full[0, 1:d_model:2] = np.float32(math.pi / 2.0)

    tm = _pick_row_tile(rows, d_pad)
    rows_pad = _round_up(rows, tm)

    passend = sequence[:, :, 1].astype(jnp.float32)                  # (b, s)

    per_row_varying = (b == max_len and s == d2 and rows > 1)
    if per_row_varying:
        # General case: p differs per output row AND per lane pair.
        # TODO(synk): in-kernel even/odd lane interleave from the half-width
        # (rows, d2) input; kept as one XLA repeat pending hardware validation.
        p = jnp.repeat(passend[:rows], 2, axis=1)                    # (rows, d_model)
        if rows_pad != rows or d_pad != d_model:
            p = jnp.pad(p, ((0, rows_pad - rows), (0, d_pad - d_model)))
        p_spec = pl.BlockSpec((tm, d_pad), lambda i: (i, 0))         # row-tiled
    else:
        # Broadcast case (B == 1 or S == 1): all returned rows share one p row.
        # Input is a single resident (1, d_pad) row (O(d_model) bytes), splat
        # across sublanes in-kernel -> ~1x output-size HBM traffic total.
        half_row = jnp.broadcast_to(passend[0:1, :], (1, d2))        # (1, d2)
        p = jnp.repeat(half_row, 2, axis=1)                          # (1, d_model)
        if d_pad != d_model:
            p = jnp.pad(p, ((0, 0), (0, d_pad - d_model)))
        p_spec = pl.BlockSpec((1, d_pad), lambda i: (0, 0))          # resident

    vmem_limit = min(32 * 1024 * 1024, max(4 * 1024 * 1024, 8 * tm * d_pad * 4))

    pe = pl.pallas_call(
        _pe_kernel,
        out_shape=jax.ShapeDtypeStruct((rows_pad, d_pad), jnp.float32),
        grid=(rows_pad // tm,),
        in_specs=[
            p_spec,
            pl.BlockSpec((1, d_pad), lambda i: (0, 0)),              # div_full (resident)
            pl.BlockSpec((1, d_pad), lambda i: (0, 0)),              # phase    (resident)
        ],
        out_specs=pl.BlockSpec((tm, d_pad), lambda i: (i, 0)),
        compiler_params=pltpu.CompilerParams(
            dimension_semantics=("parallel",),
            vmem_limit_bytes=vmem_limit,
        ),
    )(p, div_full, phase_full)

    if rows_pad != rows or d_pad != d_model:
        pe = pe[:rows, :d_model]                                     # strip padding
    return pe[None]                                                  # (1, rows, d_model)


def _reference(sequence, max_len, d_model):
    """Pure-JAX transcription of the PyTorch forward (for verification)."""
    div_term = jnp.exp(jnp.arange(0, d_model, 2, dtype=jnp.float32)
                       * -(math.log(10000.0) / d_model))
    passend = sequence[:, :, 1].astype(jnp.float32)
    half = passend * div_term
    pe = jnp.zeros((max_len, d_model), jnp.float32)
    pe = pe.at[:, 0::2].set(jnp.sin(half))
    pe = pe.at[:, 1::2].set(jnp.cos(half))
    return pe[None][:, : sequence.shape[1]]


if __name__ == "__main__":
    # torch broadcasting implicitly requires S in {1, d_model//2}, B in {1, max_len}.
    cases = [
        # (max_len, d_model, B, S)
        (8, 32, 8, 16),      # general path, lane-padded (d_model=32 -> 128)
        (16, 128, 16, 64),   # general path, fully aligned: no pad / no strip, 2 grid steps
        (16, 128, 1, 64),    # B==1 broadcast: single resident p row
        (8, 32, 8, 1),       # S==1 broadcast: single returned row
    ]
    key = jax.random.PRNGKey(0)
    for idx, (max_len, d_model, B, S) in enumerate(cases):
        key, sub = jax.random.split(key)
        sequence = jax.random.normal(sub, (B, S, 4), dtype=jnp.float32)
        fn = jax.jit(functools.partial(passend_embedding, max_len=max_len, d_model=d_model))
        out = jax.block_until_ready(fn(sequence))
        ref = _reference(sequence, max_len, d_model)
        assert out.shape == ref.shape, (idx, out.shape, ref.shape)
        assert jnp.allclose(out, ref, atol=1e-5, rtol=1e-5), f"case {idx}: mismatch vs reference"
    print("KERNEL_OK")
</pallas_src>

<mosaic_0001>
module attributes {stable_mosaic.version = 11 : i64} {
  func.func @_pe_kernel(%arg0: i32, %arg1: memref<8x128xf32, #tpu.memory_space<vmem>>, %arg2: memref<1x128xf32, #tpu.memory_space<vmem>>, %arg3: memref<1x128xf32, #tpu.memory_space<vmem>>, %arg4: memref<8x128xf32, #tpu.memory_space<vmem>>) attributes {dimension_semantics = [#tpu.dimension_semantics<parallel>], iteration_bounds = array<i64: 1>, scalar_prefetch = 0 : i64, scratch_operands = 0 : i64, tpu.core_type = #tpu.core_type<tc>, window_params = [{transform_indices = @transform_0, window_bounds = array<i64: 8, 128>}, {pipeline_mode = #tpu.pipeline_mode<synchronous>, transform_indices = @transform_1, window_bounds = array<i64: 1, 128>}, {pipeline_mode = #tpu.pipeline_mode<synchronous>, transform_indices = @transform_2, window_bounds = array<i64: 1, 128>}, {transform_indices = @transform_3, window_bounds = array<i64: 8, 128>}]} {
    %c0 = arith.constant 0 : index
    %c0_0 = arith.constant 0 : index
    %0 = vector.load %arg1[%c0, %c0_0] : memref<8x128xf32, #tpu.memory_space<vmem>>, vector<8x128xf32>
    %c0_1 = arith.constant 0 : index
    %c0_2 = arith.constant 0 : index
    %1 = vector.load %arg2[%c0_1, %c0_2] : memref<1x128xf32, #tpu.memory_space<vmem>>, vector<1x128xf32>
    %2 = vector.broadcast %1 : vector<1x128xf32> to vector<8x128xf32>
    %3 = arith.mulf %0, %2 : vector<8x128xf32>
    %c0_3 = arith.constant 0 : index
    %c0_4 = arith.constant 0 : index
    %4 = vector.load %arg3[%c0_3, %c0_4] : memref<1x128xf32, #tpu.memory_space<vmem>>, vector<1x128xf32>
    %5 = vector.broadcast %4 : vector<1x128xf32> to vector<8x128xf32>
    %6 = arith.addf %3, %5 : vector<8x128xf32>
    %7 = math.sin %6 : vector<8x128xf32>
    %c0_5 = arith.constant 0 : index
    %c0_6 = arith.constant 0 : index
    %8 = vector.load %arg4[%c0_5, %c0_6] : memref<8x128xf32, #tpu.memory_space<vmem>>, vector<8x128xf32>
    tpu.vector_store %arg4[%c0_5, %c0_6], %7 {strides = array<i32>} : memref<8x128xf32, #tpu.memory_space<vmem>>, vector<8x128xf32>,
    return
  }
  func.func @transform_0(%arg0: i32) -> (i32, i32) {
    %c0_i32 = arith.constant 0 : i32
    %c0_i32_0 = arith.constant 0 : i32
    return %arg0, %c0_i32 : i32, i32
  }
  func.func @transform_1(%arg0: i32) -> (i32, i32) {
    %c0_i32 = arith.constant 0 : i32
    %c0_i32_0 = arith.constant 0 : i32
    %c0_i32_1 = arith.constant 0 : i32
    return %c0_i32, %c0_i32_0 : i32, i32
  }
  func.func @transform_2(%arg0: i32) -> (i32, i32) {
    %c0_i32 = arith.constant 0 : i32
    %c0_i32_0 = arith.constant 0 : i32
    %c0_i32_1 = arith.constant 0 : i32
    return %c0_i32, %c0_i32_0 : i32, i32
  }
  func.func @transform_3(%arg0: i32) -> (i32, i32) {
    %c0_i32 = arith.constant 0 : i32
    %c0_i32_0 = arith.constant 0 : i32
    return %arg0, %c0_i32 : i32, i32
  }
}

</mosaic_0001>

<llo_original>
// kernel: passend_embedding.1
$region0: #{passend_embedding.1}
  #allocation0 [shape = 'u32[]', space=smem, size = 0x4, offset = 0x4, fixed_abs, tag = 'smem constant byte address 0x4 - core index']
  #allocation1 [shape = 'u32[144,128]{1,0:T(1,128)}', space=vmem, size = 0x12000, scoped, tag = 'internal scratch']
  %s0 = inlined_call_operand.vmem [shape: f32[8,128], index: 0, kind: input, shape index: {}]
  %s1 = inlined_call_operand.vmem [shape: f32[1,128], index: 1, kind: input, shape index: {}]
  %s2 = inlined_call_operand.vmem [shape: f32[1,128], index: 2, kind: input, shape index: {}]
  %s3 = inlined_call_operand.vmem [shape: f32[8,128], index: 3, kind: output, shape index: {}]
  %s4 = sld [smem:[#allocation0]]
  $region22: #{passend_embedding.1} parent=0
    _
  %s6 = ssub.s32 1, %s4
  %s7 = scalar_select 0, %s6, %s4
  // Predicated region
  $region2: #{passend_embedding.1} parent=0 // pred_check
    _
  $region3: #{passend_embedding.1} parent=0 // pred_check_branch
    %9 = sbr.rel (0) target = $region5
  $region4: #{passend_embedding.1} parent=0 // pred_region
    _
  $region5: #{passend_embedding.1} parent=0 // pred_fallthru
    _
  // Predicated region
  $region6: #{passend_embedding.1} parent=0 // pred_check
    _
  $region7: #{passend_embedding.1} parent=0 // pred_check_branch
    %11 = sbr.rel (0) target = $region9
  $region8: #{passend_embedding.1} parent=0 // pred_region
    _
  $region9: #{passend_embedding.1} parent=0 // pred_fallthru
    _
  // Predicated region
  $region10: #{passend_embedding.1} parent=0 // pred_check
    _
  $region11: #{passend_embedding.1} parent=0 // pred_check_branch
    %13 = sbr.rel (0) target = $region13
  $region12: #{passend_embedding.1} parent=0 // pred_region
    _
  $region13: #{passend_embedding.1} parent=0 // pred_fallthru
    _
  %v14 = vld [vmem:[%s0] sm:$0xff]
  %v15 = vld [vmem:[%s1] sm:$0x1]
  %v17 = vlaneseq
  %v18 = vshrl.u32 %v17, 7
  %v19 = vsub.s32 0, %v18
  %v20 = vrot.slane %v15, %v19
  %v22 = vmul.f32 %v14, %v20
  %v23 = vld [vmem:[%s2] sm:$0x1]
  %v25 = vlaneseq
  %v26 = vshrl.u32 %v25, 7
  %v27 = vsub.s32 0, %v26
  %v28 = vrot.slane %v23, %v27
  %v30 = vadd.f32 %v22, %v28
  %v31 = vand.u32 2147483647, %v30
  %vm32 = vcmp.le.f32.partialorder %v31, 0.7853982
  %vm33 = vcmp.lt.s32.totalorder %v30, 0
  %v34 = vand.u32 %v30, 2139095040
  %v35 = vshrl.u32 %v34, 23
  %v36 = vsub.s32 %v35, 127
  %v37 = vand.u32 2147483647, %v30
  %v38 = vand.u32 %v37, 8388607
  %v39 = vor.u32 %v38, 8388608
  %v40 = vsub.s32 0, %v39
  %v41 = vadd.s32 %v36, 1
  %vm42 = vcmp.gt.s32.totalorder %v41, 0
  %v43 = vsel %vm42, %v41, 0
  %v44 = vshrl.u32 %v43, 5
  %v45 = vand.u32 %v43, 31
  %v46 = vsub.s32 32, %v45
  %v47 = vshrl.u32 683565275, %v46
  %v48 = vshll.u32 683565275, %v45
  %v49 = vshrl.u32 2475754826, %v46
  %v50 = vor.u32 %v48, %v49
  %v51 = vshll.u32 2475754826, %v45
  %v52 = vshrl.u32 2131351028, %v46
  %v53 = vor.u32 %v51, %v52
  %v54 = vshll.u32 2131351028, %v45
  %v55 = vshrl.u32 2102212464, %v46
  %v56 = vor.u32 %v54, %v55
  %v57 = vshll.u32 2102212464, %v45
  %v58 = vshrl.u32 920167782, %v46
  %v59 = vor.u32 %v57, %v58
  %v60 = vshll.u32 920167782, %v45
  %v61 = vshrl.u32 1326507024, %v46
  %v62 = vor.u32 %v60, %v61
  %vm63 = vcmp.lt.s32.totalorder %v44, 1
  %vm64 = vcmp.lt.s32.totalorder %v44, 2
  %vm65 = vcmp.lt.s32.totalorder %v44, 3
  %vm66 = vcmp.lt.s32.totalorder %v44, 4
  %v67 = vsel %vm63, %v47, %v50
  %v68 = vsel %vm66, %v56, 2102212464
  %v69 = vsel %vm65, %v53, %v68
  %v70 = vsel %vm64, %v67, %v69
  %v71 = vsel %vm63, %v50, %v53
  %v72 = vsel %vm66, %v59, 920167782
  %v73 = vsel %vm65, %v56, %v72
  %v74 = vsel %vm64, %v71, %v73
  %v75 = vsel %vm63, %v53, %v56
  %v76 = vsel %vm66, %v62, 1326507024
  %v77 = vsel %vm65, %v59, %v76
  %v78 = vsel %vm64, %v75, %v77
  %v79 = vshll.u32 %v39, 8
  %v80 = vmul.u32.u64.compose %v79, %v78
  %v81 = vextract.low.u32 %v80
  %v82 = vextract.high.u32 %v80
  %v83 = vmul.u32.u64.compose %v79, %v74
  %v84 = vextract.low.u32 %v83
  %v85 = vextract.high.u32 %v83
  %v86 = vmul.u32 %v79, %v70
  %v87 = vadd.s32 %v82, %v84
  %vm88 = vc.u32 %v82, %v84
  %v89 = vadd.s32 %v85, 1
  %v90 = vsel %vm88, %v89, %v85
  %v91 = vadd.s32 %v86, %v90
  %v92 = vadd.s32 %v91, 536870912
  %v93 = vshrl.u32 %v92, 30
  %v94 = vshll.u32 %v93, 30
  %v95 = vsub.s32 %v91, %v94
  %vm96 = vcmp.lt.s32.totalorder %v95, 0
  %v97 = vsub.s32 0, %v95
  %v98 = vsel %vm96, %v97, %v95
  %v99 = vclz %v98
  %v100 = vsub.s32 %v99, 2
  %vm101 = vcmp.gt.s32.totalorder 0, %v100
  %v102 = vsel %vm101, 0, %v100
  %v103 = vsub.s32 32, %v102
  %v104 = vshll.u32 %v95, %v102
  %v105 = vshrl.u32 %v87, %v103
  %v106 = vor.u32 %v104, %v105
  %v107 = vsub.s32 4294967266, %v102
  %v108 = vadd.s32 %v107, 127
  %v109 = vshll.u32 %v108, 23
  %v110 = vor.u32 4788187, %v109
  %v111 = vand.u32 2147483647, %v110
  %v113 = vcvt.s32.f32 %v106
  %v114 = vmul.f32 %v113, %v111
  %v115 = vxor.u32 %v114, 2147483648
  %v116 = vsel %vm33, %v115, %v114
  %v117 = vsub.s32 4, %v93
  %v118 = vsel %vm33, %v117, %v93
  %v119 = vsel %vm32, %v30, %v116
  %v120 = vsel %vm32, 0, %v118
  %v121 = vcosq.f32.pop %v119
  %v122 = vsinq.f32.pop %v119
  %vm123 = vweird.f32 %v30
  %v124 = vadd.s32 %v120, 3
  %v125 = vand.u32 %v124, 3
  %vm126 = vcmp.lt.s32.totalorder %v125, 2
  %vm127 = vcmp.eq.s32.totalorder %v125, 0
  %v128 = vxor.u32 %v122, 2147483648
  %v129 = vsel %vm127, %v121, %v128
  %vm130 = vcmp.eq.s32.totalorder %v125, 2
  %v131 = vxor.u32 %v121, 2147483648
  %v132 = vsel %vm130, %v131, %v122
  %v133 = vsel %vm126, %v129, %v132
  %v134 = vsel %vm123, nan, %v133
  %135 = vst [vmem:[%s3] sm:$0xff] %v134
  // Predicated region
  $region14: #{passend_embedding.1} parent=0 // pred_check
    _
  $region15: #{passend_embedding.1} parent=0 // pred_check_branch
    %137 = sbr.rel (0) target = $region17
  $region16: #{passend_embedding.1} parent=0 // pred_region
    _
  $region17: #{passend_embedding.1} parent=0 // pred_fallthru
    _
  // Predicated region
  $region18: #{passend_embedding.1} parent=0 // pred_check
    _
  $region19: #{passend_embedding.1} parent=0 // pred_check_branch
    %139 = sbr.rel (0) target = $region21
  $region20: #{passend_embedding.1} parent=0 // pred_region
    _
  $region21: #{passend_embedding.1} parent=0 // pred_fallthru
    _

</llo_original>
